<compile_context>
chip_gen: v5e
topology: v5e:2x2
jax: 0.10.0
libtpu: 0.0.40
codegen_flags: <defaults>
</compile_context>

<pallas_src>
import functools

import jax
import jax.numpy as jnp
from jax.experimental import pallas as pl
from jax.experimental.pallas import tpu as pltpu

# ----------------------------------------------------------------------------
# Static layout constants (module spec: feat_dim=121 = 57 pn + 64 scene emb)
# ----------------------------------------------------------------------------
PN_DIM = 57           # pn_feat feature width
SCENE_DIM = 22        # obj_pos(3)+obj_rot(4)+obj_size(3)+obj_attr(12)
HID = 64
R = 6                 # num_relations (hard-coded in the module)
WIDE = (R + 1) * HID  # 448: [W_root | W_rel_0 | ... | W_rel_5]

NODE_COLS = 256       # packed node slab: pn in cols [0,128), scene in [128,256)
PN_OFF, SCENE_OFF = 0, 128

# weight-slab row offsets (all 64-aligned; bf16 sublane tile = 16)
W1_OFF, W1_ROWS = 0, 128       # Linear(22,32)  padded to (128, 64)
W2_OFF, W2_ROWS = 128, 64      # Linear(32,32)  padded to (64, 64)
W3_OFF, W3_ROWS = 192, 64      # Linear(32,64)  padded to (64, 64)
C1PN_OFF, C1PN_ROWS = 256, 128 # conv1 rows for pn_feat   (57x448 -> 128x448)
C1SC_OFF, C1SC_ROWS = 384, 64  # conv1 rows for scene emb (64x448)
C2_OFF, C2_ROWS = 448, 64      # conv2 wide weight (64x448)
C3_OFF, C3_ROWS = 512, 64      # conv3 wide weight (64x448)
WSLAB_ROWS = 576
BSLAB_ROWS = 8


# ----------------------------------------------------------------------------
# Fused kernel: scene MLP + conv1 + conv2 + conv3 (one graph per grid step)
# ----------------------------------------------------------------------------
def fused_rgcn_kernel(node_ref, a_ref, w_ref, b_ref, o_ref):
    f32, bf16 = jnp.float32, jnp.bfloat16
    H = HID

    node = node_ref[...]            # (N, 256) bf16
    a_aug = a_ref[...]              # (N, (R+1)*N) f32, block-major [I|A_0|...|A_5]
    biases = b_ref[...]             # (8, 64) f32

    def bias(i):
        return biases[i:i + 1, :]   # (1, 64) f32, broadcasts over rows

    # ---- scene_attr_net: Linear(22,32) ReLU Linear(32,32) ReLU Linear(32,64)
    #      widths padded to 64; zero-padded cols stay zero through bias+relu.
    scene = node[:, SCENE_OFF:SCENE_OFF + 128]                             # (N,128)
    h = jnp.dot(scene, w_ref[W1_OFF:W1_OFF + W1_ROWS, 0:H],
                preferred_element_type=f32) + bias(0)
    h = jnp.maximum(h, 0.0).astype(bf16)
    h = jnp.dot(h, w_ref[W2_OFF:W2_OFF + W2_ROWS, 0:H],
                preferred_element_type=f32) + bias(1)
    h = jnp.maximum(h, 0.0).astype(bf16)
    emb = (jnp.dot(h, w_ref[W3_OFF:W3_OFF + W3_ROWS, 0:H],
                   preferred_element_type=f32) + bias(2)).astype(bf16)     # (N,64)

    def conv(xw, bias_row):
        # xw: (N, (R+1)*H) f32, column block j = x @ W_j (j=0 is root).
        # Stack blocks along rows -> ((R+1)*N, H) and aggregate with ONE matmul:
        #   out = [I | A_0 | ... | A_5] @ vstack_j(x @ W_j) + b
        stacked = jnp.concatenate(
            [xw[:, j * H:(j + 1) * H] for j in range(R + 1)], axis=0)      # f32
        return jnp.dot(a_aug, stacked, preferred_element_type=f32) + bias(bias_row)

    # ---- conv1: input is [pn_feat | scene_emb]; weight rows pre-split so the
    #      feature concatenation is never materialized.
    xw1 = (jnp.dot(node[:, PN_OFF:PN_OFF + 128],
                   w_ref[C1PN_OFF:C1PN_OFF + C1PN_ROWS, :],
                   preferred_element_type=f32)
           + jnp.dot(emb, w_ref[C1SC_OFF:C1SC_OFF + C1SC_ROWS, :],
                     preferred_element_type=f32))
    x = jnp.maximum(conv(xw1, 3), 0.0).astype(bf16)

    # ---- conv2 ----
    xw2 = jnp.dot(x, w_ref[C2_OFF:C2_OFF + C2_ROWS, :], preferred_element_type=f32)
    x = jnp.maximum(conv(xw2, 4), 0.0).astype(bf16)

    # ---- conv3 (no relu) ----
    xw3 = jnp.dot(x, w_ref[C3_OFF:C3_OFF + C3_ROWS, :], preferred_element_type=f32)
    o_ref[...] = conv(xw3, 5)


def fused_rgcn(node_in, a_aug, w_slab, b_slab):
    """node_in: (B,N,256) bf16, a_aug: (B,N,(R+1)*N) f32 -> (B,N,64) f32."""
    bsz, n, _ = node_in.shape
    return pl.pallas_call(
        fused_rgcn_kernel,
        out_shape=jax.ShapeDtypeStruct((bsz, n, HID), jnp.float32),
        grid=(bsz,),
        in_specs=[
            pl.BlockSpec((None, n, NODE_COLS), lambda b: (b, 0, 0)),
            pl.BlockSpec((None, n, (R + 1) * n), lambda b: (b, 0, 0)),
            pl.BlockSpec((WSLAB_ROWS, WIDE), lambda b: (0, 0)),
            pl.BlockSpec((BSLAB_ROWS, HID), lambda b: (0, 0)),
        ],
        out_specs=pl.BlockSpec((None, n, HID), lambda b: (b, 0, 0)),
        compiler_params=pltpu.CompilerParams(
            dimension_semantics=("parallel",)),   # shards graphs across v7x TCs
    )(node_in, a_aug, w_slab, b_slab)


# ----------------------------------------------------------------------------
# One-time parameter packing (hoisted out of the per-step path)
# ----------------------------------------------------------------------------
def pack_params(params):
    f32, bf16 = jnp.float32, jnp.bfloat16
    w1, b1, w2, b2, w3, b3 = params["mlp"]
    (wr1, wo1, bc1), (wr2, wo2, bc2), (wr3, wo3, bc3) = params["convs"]

    def wide(w_rel, w_root):
        din = w_root.shape[0]
        w_rel_t = jnp.transpose(w_rel, (1, 0, 2)).reshape(din, R * HID)
        return jnp.concatenate([w_root, w_rel_t], axis=1)        # (din, (R+1)*H)

    c1 = wide(wr1, wo1)                                          # (121, 448)
    c1_pn, c1_sc = c1[:PN_DIM], c1[PN_DIM:]

    def pad_to(x, rows, cols=WIDE):
        return jnp.pad(x, ((0, rows - x.shape[0]), (0, cols - x.shape[1])))

    w_slab = jnp.concatenate([
        pad_to(w1, W1_ROWS), pad_to(w2, W2_ROWS), pad_to(w3, W3_ROWS),
        pad_to(c1_pn, C1PN_ROWS), pad_to(c1_sc, C1SC_ROWS),
        pad_to(wide(wr2, wo2), C2_ROWS), pad_to(wide(wr3, wo3), C3_ROWS),
    ], axis=0).astype(bf16)                                      # (576, 448)

    def bias_row(b):
        b = b.reshape(1, -1)
        return jnp.pad(b, ((0, 0), (0, HID - b.shape[1])))

    b_slab = jnp.concatenate(
        [bias_row(b1), bias_row(b2), bias_row(b3),
         bias_row(bc1), bias_row(bc2), bias_row(bc3),
         jnp.zeros((2, HID), f32)], axis=0).astype(f32)          # (8, 64)

    return {"w": w_slab, "b": b_slab}


# ----------------------------------------------------------------------------
# Dense normalized relational adjacency (augmented with the identity root block)
# built from (edge_index, edge_type) with one-hot matmuls — no TPU scatter.
# Matches torch_geometric RGCNConv(aggr='mean'):
#   out = x @ W_root + b + sum_r (A_r @ x) @ W_rel[r],  A_r[dst,src] = 1/deg_r(dst)
# TODO(synk): edge-list scatter has no clean in-kernel Pallas equivalent at this
# size; the adjacency is assembled outside the kernel (scalar-prefetch + iota
# compares would be the path if N scales).
# ----------------------------------------------------------------------------
def build_a_aug(edge_index, edge_type, num_nodes):
    src, dst = edge_index[0], edge_index[1]
    oh_rd = jax.nn.one_hot(edge_type * num_nodes + dst, R * num_nodes,
                           dtype=jnp.float32)                    # (E, R*N)
    oh_src = jax.nn.one_hot(src, num_nodes, dtype=jnp.float32)   # (E, N)
    counts = jnp.dot(oh_rd.T, oh_src).reshape(R, num_nodes, num_nodes)  # [r,dst,src]
    deg = counts.sum(axis=-1, keepdims=True)
    a_norm = counts / jnp.maximum(deg, 1.0)
    a_full = jnp.concatenate(
        [jnp.eye(num_nodes, dtype=jnp.float32)[None], a_norm], axis=0)  # (R+1,N,N)
    # block-major columns: a_aug[dst, j*N + src] = a_full[j, dst, src]
    return jnp.transpose(a_full, (1, 0, 2)).reshape(num_nodes, (R + 1) * num_nodes)


# ----------------------------------------------------------------------------
# Parameter construction (deterministic, synthetic)
# ----------------------------------------------------------------------------
def init_params(key, feat_dim=121, hidden_dim=64, num_relations=6):
    ks = jax.random.split(key, 16)
    s = 0.05

    def lin(k, i, o):
        return s * jax.random.normal(k, (i, o), jnp.float32)

    params = {}
    params["mlp"] = (
        lin(ks[0], 22, 32), s * jax.random.normal(ks[1], (1, 32), jnp.float32),
        lin(ks[2], 32, 32), s * jax.random.normal(ks[3], (1, 32), jnp.float32),
        lin(ks[4], 32, 64), s * jax.random.normal(ks[5], (1, 64), jnp.float32),
    )
    dims = [(feat_dim, hidden_dim), (hidden_dim, hidden_dim), (hidden_dim, hidden_dim)]
    convs = []
    for li, (din, dout) in enumerate(dims):
        kk = jax.random.split(ks[6 + li], 3)
        convs.append((
            s * jax.random.normal(kk[0], (num_relations, din, dout), jnp.float32),
            s * jax.random.normal(kk[1], (din, dout), jnp.float32),
            s * jax.random.normal(kk[2], (1, dout), jnp.float32),
        ))
    params["convs"] = convs
    return params


# ----------------------------------------------------------------------------
# Full RGCN forward (single graph, matches module's use_scene_attr=True path)
# ----------------------------------------------------------------------------
@jax.jit
def rgcn_forward(packed, pn_feat, obj_pos, obj_rot, obj_size, obj_attr,
                 edge_index, edge_type):
    n = pn_feat.shape[0]
    scene = jnp.concatenate([obj_pos, obj_rot, obj_size, obj_attr], axis=-1)  # (N,22)
    node_in = jnp.concatenate([
        pn_feat, jnp.zeros((n, 128 - PN_DIM), pn_feat.dtype),
        scene, jnp.zeros((n, 128 - SCENE_DIM), scene.dtype)],
        axis=-1).astype(jnp.bfloat16)                                         # (N,256)
    a_aug = build_a_aug(edge_index, edge_type, n)                             # (N,(R+1)N)
    out = fused_rgcn(node_in[None], a_aug[None], packed["w"], packed["b"])
    return out                                                                # (1,N,64)


# ----------------------------------------------------------------------------
# Main
# ----------------------------------------------------------------------------
if __name__ == "__main__":
    key = jax.random.PRNGKey(0)
    k_par, k_feat, k_pos, k_rot, k_size, k_attr, k_ei, k_et = jax.random.split(key, 8)

    N = 8          # nodes
    E = 16         # edges
    FEAT = 121     # conv1 input dim = 57 (pn_feat) + 64 (scene embedding)

    params = init_params(k_par, feat_dim=FEAT, hidden_dim=HID, num_relations=R)
    packed = pack_params(params)   # one-time packing, outside the per-step path

    pn_feat = jax.random.normal(k_feat, (N, PN_DIM), jnp.float32)
    obj_pos = jax.random.normal(k_pos, (N, 3), jnp.float32)
    obj_rot = jax.random.normal(k_rot, (N, 4), jnp.float32)
    obj_size = jax.random.normal(k_size, (N, 3), jnp.float32)
    obj_attr = jax.random.normal(k_attr, (N, 12), jnp.float32)   # 3+4+3+12 = 22

    edge_index = jax.random.randint(k_ei, (2, E), 0, N, jnp.int32)
    edge_type = jax.random.randint(k_et, (E,), 0, R, jnp.int32)

    out = rgcn_forward(packed, pn_feat, obj_pos, obj_rot, obj_size, obj_attr,
                       edge_index, edge_type)
    out = jax.block_until_ready(out)
    assert out.shape == (1, N, HID), out.shape
    assert bool(jnp.all(jnp.isfinite(out)))
    print("KERNEL_OK")
</pallas_src>

<mosaic_0001>
module attributes {stable_mosaic.version = 11 : i64} {
  func.func @fused_rgcn_kernel(%arg0: i32, %arg1: memref<1x8x256xbf16, #tpu.memory_space<vmem>>, %arg2: memref<1x8x56xf32, #tpu.memory_space<vmem>>, %arg3: memref<576x448xbf16, #tpu.memory_space<vmem>>, %arg4: memref<8x64xf32, #tpu.memory_space<vmem>>, %arg5: memref<1x8x64xf32, #tpu.memory_space<vmem>>) attributes {dimension_semantics = [#tpu.dimension_semantics<parallel>], iteration_bounds = array<i64: 1>, scalar_prefetch = 0 : i64, scratch_operands = 0 : i64, tpu.core_type = #tpu.core_type<tc>, window_params = [{transform_indices = @transform_0, window_bounds = array<i64: 1, 8, 256>}, {transform_indices = @transform_1, window_bounds = array<i64: 1, 8, 56>}, {pipeline_mode = #tpu.pipeline_mode<synchronous>, transform_indices = @transform_2, window_bounds = array<i64: 576, 448>}, {pipeline_mode = #tpu.pipeline_mode<synchronous>, transform_indices = @transform_3, window_bounds = array<i64: 8, 64>}, {transform_indices = @transform_4, window_bounds = array<i64: 1, 8, 64>}]} {
    %c0 = arith.constant 0 : index
    %c0_0 = arith.constant 0 : index
    %c0_1 = arith.constant 0 : index
    %0 = vector.load %arg1[%c0, %c0_0, %c0_1] : memref<1x8x256xbf16, #tpu.memory_space<vmem>>, vector<1x8x256xbf16>
    %1 = vector.shape_cast %0 : vector<1x8x256xbf16> to vector<8x256xbf16>
    %c0_2 = arith.constant 0 : index
    %c0_3 = arith.constant 0 : index
    %c0_4 = arith.constant 0 : index
    %2 = vector.load %arg2[%c0_2, %c0_3, %c0_4] : memref<1x8x56xf32, #tpu.memory_space<vmem>>, vector<1x8x56xf32>
    %3 = vector.shape_cast %2 : vector<1x8x56xf32> to vector<8x56xf32>
    %c0_5 = arith.constant 0 : index
    %c0_6 = arith.constant 0 : index
    %4 = vector.load %arg4[%c0_5, %c0_6] : memref<8x64xf32, #tpu.memory_space<vmem>>, vector<8x64xf32>
    %5 = vector.extract_strided_slice %1 {offsets = [0, 128], sizes = [8, 128], strides = [1, 1]} : vector<8x256xbf16> to vector<8x128xbf16>
    %c0_7 = arith.constant 0 : index
    %c0_8 = arith.constant 0 : index
    %6 = vector.load %arg3[%c0_7, %c0_8] : memref<576x448xbf16, #tpu.memory_space<vmem>>, vector<128x64xbf16>
    %cst = arith.constant dense<0.000000e+00> : vector<8x64xf32>
    %7 = tpu.matmul %5, %6, %cst {dimension_numbers = #tpu.dot_dimension_numbers<[1], [0], [0], [1], [0, 0, 1, 1], [], []>} : vector<8x128xbf16>, vector<128x64xbf16>, vector<8x64xf32> -> vector<8x64xf32>
    %8 = vector.extract_strided_slice %4 {offsets = [0, 0], sizes = [1, 64], strides = [1, 1]} : vector<8x64xf32> to vector<1x64xf32>
    %9 = vector.broadcast %8 : vector<1x64xf32> to vector<8x64xf32>
    %10 = arith.addf %7, %9 : vector<8x64xf32>
    %cst_9 = arith.constant 0.000000e+00 : f32
    %11 = vector.broadcast %cst_9 : f32 to vector<8x64xf32>
    %12 = arith.maximumf %10, %11 : vector<8x64xf32>
    %13 = arith.truncf %12 : vector<8x64xf32> to vector<8x64xbf16>
    %c128 = arith.constant 128 : index
    %c0_10 = arith.constant 0 : index
    %14 = vector.load %arg3[%c128, %c0_10] : memref<576x448xbf16, #tpu.memory_space<vmem>>, vector<64x64xbf16>
    %cst_11 = arith.constant dense<0.000000e+00> : vector<8x64xf32>
    %15 = tpu.matmul %13, %14, %cst_11 {dimension_numbers = #tpu.dot_dimension_numbers<[1], [0], [0], [1], [0, 0, 1, 1], [], []>} : vector<8x64xbf16>, vector<64x64xbf16>, vector<8x64xf32> -> vector<8x64xf32>
    %16 = vector.extract_strided_slice %4 {offsets = [1, 0], sizes = [1, 64], strides = [1, 1]} : vector<8x64xf32> to vector<1x64xf32>
    %17 = vector.broadcast %16 : vector<1x64xf32> to vector<8x64xf32>
    %18 = arith.addf %15, %17 : vector<8x64xf32>
    %cst_12 = arith.constant 0.000000e+00 : f32
    %19 = vector.broadcast %cst_12 : f32 to vector<8x64xf32>
    %20 = arith.maximumf %18, %19 : vector<8x64xf32>
    %21 = arith.truncf %20 : vector<8x64xf32> to vector<8x64xbf16>
    %c192 = arith.constant 192 : index
    %c0_13 = arith.constant 0 : index
    %22 = vector.load %arg3[%c192, %c0_13] : memref<576x448xbf16, #tpu.memory_space<vmem>>, vector<64x64xbf16>
    %cst_14 = arith.constant dense<0.000000e+00> : vector<8x64xf32>
    %23 = tpu.matmul %21, %22, %cst_14 {dimension_numbers = #tpu.dot_dimension_numbers<[1], [0], [0], [1], [0, 0, 1, 1], [], []>} : vector<8x64xbf16>, vector<64x64xbf16>, vector<8x64xf32> -> vector<8x64xf32>
    %24 = vector.extract_strided_slice %4 {offsets = [2, 0], sizes = [1, 64], strides = [1, 1]} : vector<8x64xf32> to vector<1x64xf32>
    %25 = vector.broadcast %24 : vector<1x64xf32> to vector<8x64xf32>
    %26 = arith.addf %23, %25 : vector<8x64xf32>
    %27 = arith.truncf %26 : vector<8x64xf32> to vector<8x64xbf16>
    %28 = vector.extract_strided_slice %1 {offsets = [0, 0], sizes = [8, 128], strides = [1, 1]} : vector<8x256xbf16> to vector<8x128xbf16>
    %c256 = arith.constant 256 : index
    %c0_15 = arith.constant 0 : index
    %29 = vector.load %arg3[%c256, %c0_15] : memref<576x448xbf16, #tpu.memory_space<vmem>>, vector<128x448xbf16>
    %cst_16 = arith.constant dense<0.000000e+00> : vector<8x448xf32>
    %30 = tpu.matmul %28, %29, %cst_16 {dimension_numbers = #tpu.dot_dimension_numbers<[1], [0], [0], [1], [0, 0, 1, 1], [], []>} : vector<8x128xbf16>, vector<128x448xbf16>, vector<8x448xf32> -> vector<8x448xf32>
    %c384 = arith.constant 384 : index
    %c0_17 = arith.constant 0 : index
    %31 = vector.load %arg3[%c384, %c0_17] : memref<576x448xbf16, #tpu.memory_space<vmem>>, vector<64x448xbf16>
    %cst_18 = arith.constant dense<0.000000e+00> : vector<8x448xf32>
    %32 = tpu.matmul %27, %31, %cst_18 {dimension_numbers = #tpu.dot_dimension_numbers<[1], [0], [0], [1], [0, 0, 1, 1], [], []>} : vector<8x64xbf16>, vector<64x448xbf16>, vector<8x448xf32> -> vector<8x448xf32>
    %33 = arith.addf %30, %32 : vector<8x448xf32>
    %34 = vector.extract_strided_slice %33 {offsets = [0, 0], sizes = [8, 64], strides = [1, 1]} : vector<8x448xf32> to vector<8x64xf32>
    %35 = vector.extract_strided_slice %33 {offsets = [0, 64], sizes = [8, 64], strides = [1, 1]} : vector<8x448xf32> to vector<8x64xf32>
    %36 = vector.extract_strided_slice %33 {offsets = [0, 128], sizes = [8, 64], strides = [1, 1]} : vector<8x448xf32> to vector<8x64xf32>
    %37 = vector.extract_strided_slice %33 {offsets = [0, 192], sizes = [8, 64], strides = [1, 1]} : vector<8x448xf32> to vector<8x64xf32>
    %38 = vector.extract_strided_slice %33 {offsets = [0, 256], sizes = [8, 64], strides = [1, 1]} : vector<8x448xf32> to vector<8x64xf32>
    %39 = vector.extract_strided_slice %33 {offsets = [0, 320], sizes = [8, 64], strides = [1, 1]} : vector<8x448xf32> to vector<8x64xf32>
    %40 = vector.extract_strided_slice %33 {offsets = [0, 384], sizes = [8, 64], strides = [1, 1]} : vector<8x448xf32> to vector<8x64xf32>
    %41 = tpu.concatenate %34, %35, %36, %37, %38, %39, %40 in 0 : vector<8x64xf32>, vector<8x64xf32>, vector<8x64xf32>, vector<8x64xf32>, vector<8x64xf32>, vector<8x64xf32>, vector<8x64xf32> -> vector<56x64xf32>
    %cst_19 = arith.constant dense<0.000000e+00> : vector<8x64xf32>
    %42 = tpu.matmul %3, %41, %cst_19 {dimension_numbers = #tpu.dot_dimension_numbers<[1], [0], [0], [1], [0, 0, 1, 1], [], []>} : vector<8x56xf32>, vector<56x64xf32>, vector<8x64xf32> -> vector<8x64xf32>
    %43 = vector.extract_strided_slice %4 {offsets = [3, 0], sizes = [1, 64], strides = [1, 1]} : vector<8x64xf32> to vector<1x64xf32>
    %44 = vector.broadcast %43 : vector<1x64xf32> to vector<8x64xf32>
    %45 = arith.addf %42, %44 : vector<8x64xf32>
    %cst_20 = arith.constant 0.000000e+00 : f32
    %46 = vector.broadcast %cst_20 : f32 to vector<8x64xf32>
    %47 = arith.maximumf %45, %46 : vector<8x64xf32>
    %48 = arith.truncf %47 : vector<8x64xf32> to vector<8x64xbf16>
    %c448 = arith.constant 448 : index
    %c0_21 = arith.constant 0 : index
    %49 = vector.load %arg3[%c448, %c0_21] : memref<576x448xbf16, #tpu.memory_space<vmem>>, vector<64x448xbf16>
    %cst_22 = arith.constant dense<0.000000e+00> : vector<8x448xf32>
    %50 = tpu.matmul %48, %49, %cst_22 {dimension_numbers = #tpu.dot_dimension_numbers<[1], [0], [0], [1], [0, 0, 1, 1], [], []>} : vector<8x64xbf16>, vector<64x448xbf16>, vector<8x448xf32> -> vector<8x448xf32>
    %51 = vector.extract_strided_slice %50 {offsets = [0, 0], sizes = [8, 64], strides = [1, 1]} : vector<8x448xf32> to vector<8x64xf32>
    %52 = vector.extract_strided_slice %50 {offsets = [0, 64], sizes = [8, 64], strides = [1, 1]} : vector<8x448xf32> to vector<8x64xf32>
    %53 = vector.extract_strided_slice %50 {offsets = [0, 128], sizes = [8, 64], strides = [1, 1]} : vector<8x448xf32> to vector<8x64xf32>
    %54 = vector.extract_strided_slice %50 {offsets = [0, 192], sizes = [8, 64], strides = [1, 1]} : vector<8x448xf32> to vector<8x64xf32>
    %55 = vector.extract_strided_slice %50 {offsets = [0, 256], sizes = [8, 64], strides = [1, 1]} : vector<8x448xf32> to vector<8x64xf32>
    %56 = vector.extract_strided_slice %50 {offsets = [0, 320], sizes = [8, 64], strides = [1, 1]} : vector<8x448xf32> to vector<8x64xf32>
    %57 = vector.extract_strided_slice %50 {offsets = [0, 384], sizes = [8, 64], strides = [1, 1]} : vector<8x448xf32> to vector<8x64xf32>
    %58 = tpu.concatenate %51, %52, %53, %54, %55, %56, %57 in 0 : vector<8x64xf32>, vector<8x64xf32>, vector<8x64xf32>, vector<8x64xf32>, vector<8x64xf32>, vector<8x64xf32>, vector<8x64xf32> -> vector<56x64xf32>
    %cst_23 = arith.constant dense<0.000000e+00> : vector<8x64xf32>
    %59 = tpu.matmul %3, %58, %cst_23 {dimension_numbers = #tpu.dot_dimension_numbers<[1], [0], [0], [1], [0, 0, 1, 1], [], []>} : vector<8x56xf32>, vector<56x64xf32>, vector<8x64xf32> -> vector<8x64xf32>
    %60 = vector.extract_strided_slice %4 {offsets = [4, 0], sizes = [1, 64], strides = [1, 1]} : vector<8x64xf32> to vector<1x64xf32>
    %61 = vector.broadcast %60 : vector<1x64xf32> to vector<8x64xf32>
    %62 = arith.addf %59, %61 : vector<8x64xf32>
    %cst_24 = arith.constant 0.000000e+00 : f32
    %63 = vector.broadcast %cst_24 : f32 to vector<8x64xf32>
    %64 = arith.maximumf %62, %63 : vector<8x64xf32>
    %65 = arith.truncf %64 : vector<8x64xf32> to vector<8x64xbf16>
    %c512 = arith.constant 512 : index
    %c0_25 = arith.constant 0 : index
    %66 = vector.load %arg3[%c512, %c0_25] : memref<576x448xbf16, #tpu.memory_space<vmem>>, vector<64x448xbf16>
    %cst_26 = arith.constant dense<0.000000e+00> : vector<8x448xf32>
    %67 = tpu.matmul %65, %66, %cst_26 {dimension_numbers = #tpu.dot_dimension_numbers<[1], [0], [0], [1], [0, 0, 1, 1], [], []>} : vector<8x64xbf16>, vector<64x448xbf16>, vector<8x448xf32> -> vector<8x448xf32>
    %68 = vector.extract_strided_slice %67 {offsets = [0, 0], sizes = [8, 64], strides = [1, 1]} : vector<8x448xf32> to vector<8x64xf32>
    %69 = vector.extract_strided_slice %67 {offsets = [0, 64], sizes = [8, 64], strides = [1, 1]} : vector<8x448xf32> to vector<8x64xf32>
    %70 = vector.extract_strided_slice %67 {offsets = [0, 128], sizes = [8, 64], strides = [1, 1]} : vector<8x448xf32> to vector<8x64xf32>
    %71 = vector.extract_strided_slice %67 {offsets = [0, 192], sizes = [8, 64], strides = [1, 1]} : vector<8x448xf32> to vector<8x64xf32>
    %72 = vector.extract_strided_slice %67 {offsets = [0, 256], sizes = [8, 64], strides = [1, 1]} : vector<8x448xf32> to vector<8x64xf32>
    %73 = vector.extract_strided_slice %67 {offsets = [0, 320], sizes = [8, 64], strides = [1, 1]} : vector<8x448xf32> to vector<8x64xf32>
    %74 = vector.extract_strided_slice %67 {offsets = [0, 384], sizes = [8, 64], strides = [1, 1]} : vector<8x448xf32> to vector<8x64xf32>
    %75 = tpu.concatenate %68, %69, %70, %71, %72, %73, %74 in 0 : vector<8x64xf32>, vector<8x64xf32>, vector<8x64xf32>, vector<8x64xf32>, vector<8x64xf32>, vector<8x64xf32>, vector<8x64xf32> -> vector<56x64xf32>
    %cst_27 = arith.constant dense<0.000000e+00> : vector<8x64xf32>
    %76 = tpu.matmul %3, %75, %cst_27 {dimension_numbers = #tpu.dot_dimension_numbers<[1], [0], [0], [1], [0, 0, 1, 1], [], []>} : vector<8x56xf32>, vector<56x64xf32>, vector<8x64xf32> -> vector<8x64xf32>
    %77 = vector.extract_strided_slice %4 {offsets = [5, 0], sizes = [1, 64], strides = [1, 1]} : vector<8x64xf32> to vector<1x64xf32>
    %78 = vector.broadcast %77 : vector<1x64xf32> to vector<8x64xf32>
    %79 = arith.addf %76, %78 : vector<8x64xf32>
    %c0_28 = arith.constant 0 : index
    %c0_29 = arith.constant 0 : index
    %c0_30 = arith.constant 0 : index
    %80 = vector.load %arg5[%c0_28, %c0_29, %c0_30] : memref<1x8x64xf32, #tpu.memory_space<vmem>>, vector<1x8x64xf32>
    %81 = vector.shape_cast %80 : vector<1x8x64xf32> to vector<8x64xf32>
    %82 = vector.shape_cast %79 : vector<8x64xf32> to vector<1x8x64xf32>
    tpu.vector_store %arg5[%c0_28, %c0_29, %c0_30], %82 {strides = array<i32>} : memref<1x8x64xf32, #tpu.memory_space<vmem>>, vector<1x8x64xf32>,
    return
  }
  func.func @transform_0(%arg0: i32) -> (i32, i32, i32) {
    %c0_i32 = arith.constant 0 : i32
    %c0_i32_0 = arith.constant 0 : i32
    %c0_i32_1 = arith.constant 0 : i32
    return %arg0, %c0_i32, %c0_i32_0 : i32, i32, i32
  }
  func.func @transform_1(%arg0: i32) -> (i32, i32, i32) {
    %c0_i32 = arith.constant 0 : i32
    %c0_i32_0 = arith.constant 0 : i32
    %c0_i32_1 = arith.constant 0 : i32
    return %arg0, %c0_i32, %c0_i32_0 : i32, i32, i32
  }
  func.func @transform_2(%arg0: i32) -> (i32, i32) {
    %c0_i32 = arith.constant 0 : i32
    %c0_i32_0 = arith.constant 0 : i32
    %c0_i32_1 = arith.constant 0 : i32
    return %c0_i32, %c0_i32_0 : i32, i32
  }
  func.func @transform_3(%arg0: i32) -> (i32, i32) {
    %c0_i32 = arith.constant 0 : i32
    %c0_i32_0 = arith.constant 0 : i32
    %c0_i32_1 = arith.constant 0 : i32
    return %c0_i32, %c0_i32_0 : i32, i32
  }
  func.func @transform_4(%arg0: i32) -> (i32, i32, i32) {
    %c0_i32 = arith.constant 0 : i32
    %c0_i32_0 = arith.constant 0 : i32
    %c0_i32_1 = arith.constant 0 : i32
    return %arg0, %c0_i32, %c0_i32_0 : i32, i32, i32
  }
}

</mosaic_0001>

<llo_original>
// kernel: rgcn_forward.1
$region0: #{rgcn_forward.1}
  #allocation0 [shape = 'u32[]', space=smem, size = 0x4, offset = 0x4, fixed_abs, tag = 'smem constant byte address 0x4 - core index']
  #allocation1 [shape = 'u32[72,128]{1,0:T(1,128)}', space=vmem, size = 0x9000, scoped, tag = 'internal scratch']
  %s0 = inlined_call_operand.vmem [shape: bf16[1,8,256], index: 0, kind: input, shape index: {}]
  %s1 = inlined_call_operand.vmem [shape: f32[1,8,56], index: 1, kind: input, shape index: {}]
  %s2 = inlined_call_operand.vmem [shape: bf16[576,448], index: 2, kind: input, shape index: {}]
  %s3 = inlined_call_operand.vmem [shape: f32[8,64], index: 3, kind: input, shape index: {}]
  %s4 = inlined_call_operand.hbm [shape: f32[1,8,64], index: 4, kind: output, shape index: {}]
  %s5 = sld [smem:[#allocation0]]
  $region26: #{rgcn_forward.1} parent=0
    _
  %s7 = ssub.s32 1, %s5
  %s8 = scalar_select 0, %s7, %s5
  $region1: #{rgcn_forward.1} parent=0
    #allocation2 [shape = 'u8[4096]{0}', space=vmem, size = 0x1000, scoped, tag = 'output window, operand 0, single buffered']
    #allocation3 [shape = 's32[1]{0}', space=sflag, size = 0x4, scoped, tag = 'scoped memory for rgcn_forward.1']
    %9 = vsyncpa [#allocation3], 0
    // Predicated region
    $region2: #{rgcn_forward.1} parent=1 // pred_check
      _
    $region3: #{rgcn_forward.1} parent=1 // pred_check_branch
      %11 = sbr.rel (0) target = $region5
    $region4: #{rgcn_forward.1} parent=1 // pred_region
      _
    $region5: #{rgcn_forward.1} parent=1 // pred_fallthru
      _
    // Predicated region
    $region6: #{rgcn_forward.1} parent=1 // pred_check
      _
    $region7: #{rgcn_forward.1} parent=1 // pred_check_branch
      %13 = sbr.rel (0) target = $region9
    $region8: #{rgcn_forward.1} parent=1 // pred_region
      _
    $region9: #{rgcn_forward.1} parent=1 // pred_fallthru
      _
    // Predicated region
    $region10: #{rgcn_forward.1} parent=1 // pred_check
      _
    $region11: #{rgcn_forward.1} parent=1 // pred_check_branch
      %15 = sbr.rel (0) target = $region13
    $region12: #{rgcn_forward.1} parent=1 // pred_region
      _
    $region13: #{rgcn_forward.1} parent=1 // pred_fallthru
      _
    // Predicated region
    $region14: #{rgcn_forward.1} parent=1 // pred_check
      _
    $region15: #{rgcn_forward.1} parent=1 // pred_check_branch
      %17 = sbr.rel (0) target = $region17
    $region16: #{rgcn_forward.1} parent=1 // pred_region
      _
    $region17: #{rgcn_forward.1} parent=1 // pred_fallthru
      _
    %v19 = vld [vmem:[%s0] sm:$0xff]
    %v20 = vld [vmem:[%s1] sm:$0xff]
    %v21 = vld [vmem:[%s3] sm:$0xff]
    %v22 = vld [vmem:[%s2] sm:$0xf]
    %v23 = vld [vmem:[%s2 + $0x10] sm:$0xf]
    %v24 = vld [vmem:[%s2 + $0x20] sm:$0xf]
    %v25 = vld [vmem:[%s2 + $0x30] sm:$0xf]
    %v26 = vld [vmem:[%s2 + $0x40] sm:$0xf]
    %v27 = vld [vmem:[%s2 + $0x50] sm:$0xf]
    %v28 = vld [vmem:[%s2 + $0x60] sm:$0xf]
    %v29 = vld [vmem:[%s2 + $0x70] sm:$0xf]
    %v30 = vld [vmem:[%s2 + $0x80] sm:$0xf]
    %v31 = vld [vmem:[%s2 + $0x90] sm:$0xf]
    %v32 = vld [vmem:[%s2 + $0xa0] sm:$0xf]
    %v33 = vld [vmem:[%s2 + $0xb0] sm:$0xf]
    %v34 = vld [vmem:[%s2 + $0xc0] sm:$0xf]
    %v35 = vld [vmem:[%s2 + $0xd0] sm:$0xf]
    %v36 = vld [vmem:[%s2 + $0xe0] sm:$0xf]
    %v37 = vld [vmem:[%s2 + $0xf0] sm:$0xf]
    %v38 = vperm.slane %v21, 0
    %v40 = vunpack.c.h.b16 %v19
    %v41 = vpack.c.b16 %v40, %v40
    %v59 = vunpack.c.l.b16 %v22
    %v60 = vunpack.c.l.b16 %v23
    %v61 = vunpack.c.l.b16 %v24
    %v62 = vunpack.c.l.b16 %v25
    %v63 = vunpack.c.l.b16 %v26
    %v64 = vunpack.c.l.b16 %v27
    %v65 = vunpack.c.l.b16 %v28
    %v66 = vunpack.c.l.b16 %v29
    %v67 = vunpack.c.l.b16 %v30
    %v68 = vunpack.c.l.b16 %v31
    %v69 = vunpack.c.l.b16 %v32
    %v70 = vunpack.c.l.b16 %v33
    %v71 = vunpack.c.l.b16 %v34
    %v72 = vunpack.c.l.b16 %v35
    %v73 = vunpack.c.l.b16 %v36
    %v74 = vunpack.c.l.b16 %v37
    %v75 = vpack.c.b16 %v60, %v59
    %v76 = vpack.c.b16 %v62, %v61
    %v77 = vpack.c.b16 %v64, %v63
    %v78 = vpack.c.b16 %v66, %v65
    %v79 = vpack.c.b16 %v68, %v67
    %v80 = vpack.c.b16 %v70, %v69
    %v81 = vpack.c.b16 %v72, %v71
    %v82 = vpack.c.b16 %v74, %v73
    %91 = vmatpush.bf16.msra.mxu0 %v82
    %92 = vmatpush.bf16.msra.mxu0 %v81
    %93 = vmatpush.bf16.msra.mxu0 %v80
    %94 = vmatpush.bf16.msra.mxu0 %v79
    %95 = vmatpush.bf16.msra.mxu0 %v78
    %96 = vmatpush.bf16.msra.mxu0 %v77
    %97 = vmatpush.bf16.msra.mxu0 %v76
    %98 = vmatpush.bf16.msra.mxu0 %v75
    %99 = vmatmul.bf16.gmra.mxu0 %v41
    %v100 = vpop.f32.mrf.mxu0
    %v101 = vadd.f32 %v38, %v100
    %v102 = vpop.f32.mrf.mxu0
    %103 = vdwg.mxu0
    %v104 = vmax.f32 %v101, 0.0
    %v105 = vpack.c.bf16 %v104, %v104
    %v106 = vld [vmem:[%s2 + $0x100] sm:$0xf]
    %v107 = vld [vmem:[%s2 + $0x110] sm:$0xf]
    %v108 = vld [vmem:[%s2 + $0x120] sm:$0xf]
    %v109 = vld [vmem:[%s2 + $0x130] sm:$0xf]
    %v110 = vld [vmem:[%s2 + $0x140] sm:$0xf]
    %v111 = vld [vmem:[%s2 + $0x150] sm:$0xf]
    %v112 = vld [vmem:[%s2 + $0x160] sm:$0xf]
    %v113 = vld [vmem:[%s2 + $0x170] sm:$0xf]
    %v114 = vperm.slane %v21, 1
    %v123 = vunpack.c.l.b16 %v106
    %v124 = vunpack.c.l.b16 %v107
    %v125 = vunpack.c.l.b16 %v108
    %v126 = vunpack.c.l.b16 %v109
    %v127 = vunpack.c.l.b16 %v110
    %v128 = vunpack.c.l.b16 %v111
    %v129 = vunpack.c.l.b16 %v112
    %v130 = vunpack.c.l.b16 %v113
    %v131 = vpack.c.b16 %v124, %v123
    %v132 = vpack.c.b16 %v126, %v125
    %v133 = vpack.c.b16 %v128, %v127
    %v134 = vpack.c.b16 %v130, %v129
    %vm139 = vcmask 523264
    %v141 = vsel %vm139, %v105, 0
    %143 = vmatpush.bf16.msra.mxu0 0
    %144 = vmatpush.bf16.msra.mxu0 0
    %145 = vmatpush.bf16.msra.mxu0 0
    %146 = vmatpush.bf16.msra.mxu0 0
    %147 = vmatpush.bf16.msra.mxu0 %v134
    %148 = vmatpush.bf16.msra.mxu0 %v133
    %149 = vmatpush.bf16.msra.mxu0 %v132
    %150 = vmatpush.bf16.msra.mxu0 %v131
    %151 = vmatmul.bf16.gmra.mxu0 %v141
    %v152 = vpop.f32.mrf.mxu0
    %v153 = vadd.f32 %v114, %v152
    %v154 = vpop.f32.mrf.mxu0
    %155 = vdwg.mxu0
    %v156 = vmax.f32 %v153, 0.0
    %v157 = vpack.c.bf16 %v156, %v156
    %v158 = vld [vmem:[%s2 + $0x180] sm:$0xf]
    %v159 = vld [vmem:[%s2 + $0x190] sm:$0xf]
    %v160 = vld [vmem:[%s2 + $0x1a0] sm:$0xf]
    %v161 = vld [vmem:[%s2 + $0x1b0] sm:$0xf]
    %v162 = vld [vmem:[%s2 + $0x1c0] sm:$0xf]
    %v163 = vld [vmem:[%s2 + $0x1d0] sm:$0xf]
    %v164 = vld [vmem:[%s2 + $0x1e0] sm:$0xf]
    %v165 = vld [vmem:[%s2 + $0x1f0] sm:$0xf]
    %v166 = vperm.slane %v21, 2
    %v175 = vunpack.c.l.b16 %v158
    %v176 = vunpack.c.l.b16 %v159
    %v177 = vunpack.c.l.b16 %v160
    %v178 = vunpack.c.l.b16 %v161
    %v179 = vunpack.c.l.b16 %v162
    %v180 = vunpack.c.l.b16 %v163
    %v181 = vunpack.c.l.b16 %v164
    %v182 = vunpack.c.l.b16 %v165
    %v183 = vpack.c.b16 %v176, %v175
    %v184 = vpack.c.b16 %v178, %v177
    %v185 = vpack.c.b16 %v180, %v179
    %v186 = vpack.c.b16 %v182, %v181
    %v192 = vsel %vm139, %v157, 0
    %194 = vmatpush.bf16.msra.mxu0 0
    %195 = vmatpush.bf16.msra.mxu0 0
    %196 = vmatpush.bf16.msra.mxu0 0
    %197 = vmatpush.bf16.msra.mxu0 0
    %198 = vmatpush.bf16.msra.mxu0 %v186
    %199 = vmatpush.bf16.msra.mxu0 %v185
    %200 = vmatpush.bf16.msra.mxu0 %v184
    %201 = vmatpush.bf16.msra.mxu0 %v183
    %202 = vmatmul.bf16.gmra.mxu0 %v192
    %v203 = vpop.f32.mrf.mxu0
    %v204 = vadd.f32 %v166, %v203
    %v205 = vpop.f32.mrf.mxu0
    %206 = vdwg.mxu0
    %v207 = vpack.c.bf16 %v204, %v204
    %v208 = vld [vmem:[%s2 + $0x200] sm:$0xff]
    %v209 = vld [vmem:[%s2 + $0x208] sm:$0xff]
    %v210 = vld [vmem:[%s2 + $0x210] sm:$0xff]
    %v211 = vld [vmem:[%s2 + $0x218] sm:$0xff]
    %v212 = vld [vmem:[%s2 + $0x220] sm:$0xff]
    %v213 = vld [vmem:[%s2 + $0x228] sm:$0xff]
    %v214 = vld [vmem:[%s2 + $0x230] sm:$0xff]
    %v215 = vld [vmem:[%s2 + $0x238] sm:$0xff]
    %v216 = vld [vmem:[%s2 + $0x240] sm:$0xff]
    %v217 = vld [vmem:[%s2 + $0x248] sm:$0xff]
    %v218 = vld [vmem:[%s2 + $0x250] sm:$0xff]
    %v219 = vld [vmem:[%s2 + $0x258] sm:$0xff]
    %v220 = vld [vmem:[%s2 + $0x260] sm:$0xff]
    %v221 = vld [vmem:[%s2 + $0x268] sm:$0xff]
    %v222 = vld [vmem:[%s2 + $0x270] sm:$0xff]
    %v223 = vld [vmem:[%s2 + $0x278] sm:$0xff]
    %v224 = vld [vmem:[%s2 + $0x280] sm:$0xff]
    %v225 = vld [vmem:[%s2 + $0x288] sm:$0xff]
    %v226 = vld [vmem:[%s2 + $0x290] sm:$0xff]
    %v227 = vld [vmem:[%s2 + $0x298] sm:$0xff]
    %v228 = vld [vmem:[%s2 + $0x2a0] sm:$0xff]
    %v229 = vld [vmem:[%s2 + $0x2a8] sm:$0xff]
    %v230 = vld [vmem:[%s2 + $0x2b0] sm:$0xff]
    %v231 = vld [vmem:[%s2 + $0x2b8] sm:$0xff]
    %v232 = vld [vmem:[%s2 + $0x2c0] sm:$0xff]
    %v233 = vld [vmem:[%s2 + $0x2c8] sm:$0xff]
    %v234 = vld [vmem:[%s2 + $0x2d0] sm:$0xff]
    %v235 = vld [vmem:[%s2 + $0x2d8] sm:$0xff]
    %v236 = vld [vmem:[%s2 + $0x2e0] sm:$0xff]
    %v237 = vld [vmem:[%s2 + $0x2e8] sm:$0xff]
    %v238 = vld [vmem:[%s2 + $0x2f0] sm:$0xff]
    %v239 = vld [vmem:[%s2 + $0x2f8] sm:$0xff]
    %v240 = vld [vmem:[%s2 + $0x300] sm:$0xff]
    %v241 = vld [vmem:[%s2 + $0x308] sm:$0xff]
    %v242 = vld [vmem:[%s2 + $0x310] sm:$0xff]
    %v243 = vld [vmem:[%s2 + $0x318] sm:$0xff]
    %v244 = vld [vmem:[%s2 + $0x320] sm:$0xff]
    %v245 = vld [vmem:[%s2 + $0x328] sm:$0xff]
    %v246 = vld [vmem:[%s2 + $0x330] sm:$0xff]
    %v247 = vld [vmem:[%s2 + $0x338] sm:$0xff]
    %v248 = vld [vmem:[%s2 + $0x340] sm:$0xff]
    %v249 = vld [vmem:[%s2 + $0x348] sm:$0xff]
    %v250 = vld [vmem:[%s2 + $0x350] sm:$0xff]
    %v251 = vld [vmem:[%s2 + $0x358] sm:$0xff]
    %v252 = vld [vmem:[%s2 + $0x360] sm:$0xff]
    %v253 = vld [vmem:[%s2 + $0x368] sm:$0xff]
    %v254 = vld [vmem:[%s2 + $0x370] sm:$0xff]
    %v255 = vld [vmem:[%s2 + $0x378] sm:$0xff]
    %v272 = vunpack.c.l.b16 %v240
    %v273 = vunpack.c.h.b16 %v240
    %v274 = vunpack.c.l.b16 %v241
    %v275 = vunpack.c.h.b16 %v241
    %v276 = vunpack.c.l.b16 %v242
    %v277 = vunpack.c.h.b16 %v242
    %v278 = vunpack.c.l.b16 %v243
    %v279 = vunpack.c.h.b16 %v243
    %v280 = vunpack.c.l.b16 %v244
    %v281 = vunpack.c.h.b16 %v244
    %v282 = vunpack.c.l.b16 %v245
    %v283 = vunpack.c.h.b16 %v245
    %v284 = vunpack.c.l.b16 %v246
    %v285 = vunpack.c.h.b16 %v246
    %v286 = vunpack.c.l.b16 %v247
    %v287 = vunpack.c.h.b16 %v247
    %v288 = vunpack.c.l.b16 %v248
    %v289 = vunpack.c.h.b16 %v248
    %v290 = vunpack.c.l.b16 %v249
    %v291 = vunpack.c.h.b16 %v249
    %v292 = vunpack.c.l.b16 %v250
    %v293 = vunpack.c.h.b16 %v250
    %v294 = vunpack.c.l.b16 %v251
    %v295 = vunpack.c.h.b16 %v251
    %v296 = vunpack.c.l.b16 %v252
    %v297 = vunpack.c.h.b16 %v252
    %v298 = vunpack.c.l.b16 %v253
    %v299 = vunpack.c.h.b16 %v253
    %v300 = vunpack.c.l.b16 %v254
    %v301 = vunpack.c.h.b16 %v254
    %v302 = vunpack.c.l.b16 %v255
    %v303 = vunpack.c.h.b16 %v255
    %v304 = vpack.c.b16 %v276, %v272
    %v305 = vpack.c.b16 %v277, %v273
    %v306 = vpack.c.b16 %v278, %v274
    %v307 = vpack.c.b16 %v279, %v275
    %v308 = vpack.c.b16 %v284, %v280
    %v309 = vpack.c.b16 %v285, %v281
    %v310 = vpack.c.b16 %v286, %v282
    %v311 = vpack.c.b16 %v287, %v283
    %v312 = vpack.c.b16 %v292, %v288
    %v313 = vpack.c.b16 %v293, %v289
    %v314 = vpack.c.b16 %v294, %v290
    %v315 = vpack.c.b16 %v295, %v291
    %v316 = vpack.c.b16 %v300, %v296
    %v317 = vpack.c.b16 %v301, %v297
    %v318 = vpack.c.b16 %v302, %v298
    %v319 = vpack.c.b16 %v303, %v299
    %v337 = vsel %vm139, %v207, 0
    %339 = vmatpush.bf16.msra.mxu0 0
    %340 = vmatpush.bf16.msra.mxu0 0
    %341 = vmatpush.bf16.msra.mxu0 0
    %342 = vmatpush.bf16.msra.mxu0 0
    %343 = vmatpush.bf16.msra.mxu0 %v316
    %344 = vmatpush.bf16.msra.mxu0 %v312
    %345 = vmatpush.bf16.msra.mxu0 %v308
    %346 = vmatpush.bf16.msra.mxu0 %v304
    %347 = vmatmul.bf16.gmra.mxu0 %v337
    %v348 = vpop.f32.mrf.mxu0
    %v349 = vadd.f32 0.0, %v348
    %v350 = vpop.f32.mrf.mxu0
    %351 = vdwg.mxu0
    %352 = vmatpush.bf16.msra.mxu0 0
    %353 = vmatpush.bf16.msra.mxu0 0
    %354 = vmatpush.bf16.msra.mxu0 0
    %355 = vmatpush.bf16.msra.mxu0 0
    %356 = vmatpush.bf16.msra.mxu0 %v317
    %357 = vmatpush.bf16.msra.mxu0 %v313
    %358 = vmatpush.bf16.msra.mxu0 %v309
    %359 = vmatpush.bf16.msra.mxu0 %v305
    %360 = vmatmul.bf16.gmra.mxu0 %v337
    %v361 = vpop.f32.mrf.mxu0
    %v362 = vadd.f32 0.0, %v361
    %v363 = vpop.f32.mrf.mxu0
    %364 = vdwg.mxu0
    %365 = vmatpush.bf16.msra.mxu0 0
    %366 = vmatpush.bf16.msra.mxu0 0
    %367 = vmatpush.bf16.msra.mxu0 0
    %368 = vmatpush.bf16.msra.mxu0 0
    %369 = vmatpush.bf16.msra.mxu0 %v318
    %370 = vmatpush.bf16.msra.mxu0 %v314
    %371 = vmatpush.bf16.msra.mxu0 %v310
    %372 = vmatpush.bf16.msra.mxu0 %v306
    %373 = vmatmul.bf16.gmra.mxu0 %v337
    %v374 = vpop.f32.mrf.mxu0
    %v375 = vadd.f32 0.0, %v374
    %v376 = vpop.f32.mrf.mxu0
    %377 = vdwg.mxu0
    %378 = vmatpush.bf16.msra.mxu0 0
    %379 = vmatpush.bf16.msra.mxu0 0
    %380 = vmatpush.bf16.msra.mxu0 0
    %381 = vmatpush.bf16.msra.mxu0 0
    %382 = vmatpush.bf16.msra.mxu0 %v319
    %383 = vmatpush.bf16.msra.mxu0 %v315
    %384 = vmatpush.bf16.msra.mxu0 %v311
    %385 = vmatpush.bf16.msra.mxu0 %v307
    %386 = vmatmul.bf16.gmra.mxu0 %v337
    %v387 = vpop.f32.mrf.mxu0
    %v388 = vadd.f32 0.0, %v387
    %v389 = vpop.f32.mrf.mxu0
    %390 = vdwg.mxu0
    %v423 = vunpack.c.l.b16 %v208
    %v424 = vunpack.c.h.b16 %v208
    %v425 = vunpack.c.l.b16 %v209
    %v426 = vunpack.c.h.b16 %v209
    %v427 = vunpack.c.l.b16 %v210
    %v428 = vunpack.c.h.b16 %v210
    %v429 = vunpack.c.l.b16 %v211
    %v430 = vunpack.c.h.b16 %v211
    %v431 = vunpack.c.l.b16 %v212
    %v432 = vunpack.c.h.b16 %v212
    %v433 = vunpack.c.l.b16 %v213
    %v434 = vunpack.c.h.b16 %v213
    %v435 = vunpack.c.l.b16 %v214
    %v436 = vunpack.c.h.b16 %v214
    %v437 = vunpack.c.l.b16 %v215
    %v438 = vunpack.c.h.b16 %v215
    %v439 = vunpack.c.l.b16 %v216
    %v440 = vunpack.c.h.b16 %v216
    %v441 = vunpack.c.l.b16 %v217
    %v442 = vunpack.c.h.b16 %v217
    %v443 = vunpack.c.l.b16 %v218
    %v444 = vunpack.c.h.b16 %v218
    %v445 = vunpack.c.l.b16 %v219
    %v446 = vunpack.c.h.b16 %v219
    %v447 = vunpack.c.l.b16 %v220
    %v448 = vunpack.c.h.b16 %v220
    %v449 = vunpack.c.l.b16 %v221
    %v450 = vunpack.c.h.b16 %v221
    %v451 = vunpack.c.l.b16 %v222
    %v452 = vunpack.c.h.b16 %v222
    %v453 = vunpack.c.l.b16 %v223
    %v454 = vunpack.c.h.b16 %v223
    %v455 = vunpack.c.l.b16 %v224
    %v456 = vunpack.c.h.b16 %v224
    %v457 = vunpack.c.l.b16 %v225
    %v458 = vunpack.c.h.b16 %v225
    %v459 = vunpack.c.l.b16 %v226
    %v460 = vunpack.c.h.b16 %v226
    %v461 = vunpack.c.l.b16 %v227
    %v462 = vunpack.c.h.b16 %v227
    %v463 = vunpack.c.l.b16 %v228
    %v464 = vunpack.c.h.b16 %v228
    %v465 = vunpack.c.l.b16 %v229
    %v466 = vunpack.c.h.b16 %v229
    %v467 = vunpack.c.l.b16 %v230
    %v468 = vunpack.c.h.b16 %v230
    %v469 = vunpack.c.l.b16 %v231
    %v470 = vunpack.c.h.b16 %v231
    %v471 = vunpack.c.l.b16 %v232
    %v472 = vunpack.c.h.b16 %v232
    %v473 = vunpack.c.l.b16 %v233
    %v474 = vunpack.c.h.b16 %v233
    %v475 = vunpack.c.l.b16 %v234
    %v476 = vunpack.c.h.b16 %v234
    %v477 = vunpack.c.l.b16 %v235
    %v478 = vunpack.c.h.b16 %v235
    %v479 = vunpack.c.l.b16 %v236
    %v480 = vunpack.c.h.b16 %v236
    %v481 = vunpack.c.l.b16 %v237
    %v482 = vunpack.c.h.b16 %v237
    %v483 = vunpack.c.l.b16 %v238
    %v484 = vunpack.c.h.b16 %v238
    %v485 = vunpack.c.l.b16 %v239
    %v486 = vunpack.c.h.b16 %v239
    %v487 = vpack.c.b16 %v427, %v423
    %v488 = vpack.c.b16 %v428, %v424
    %v489 = vpack.c.b16 %v429, %v425
    %v490 = vpack.c.b16 %v430, %v426
    %v491 = vpack.c.b16 %v435, %v431
    %v492 = vpack.c.b16 %v436, %v432
    %v493 = vpack.c.b16 %v437, %v433
    %v494 = vpack.c.b16 %v438, %v434
    %v495 = vpack.c.b16 %v443, %v439
    %v496 = vpack.c.b16 %v444, %v440
    %v497 = vpack.c.b16 %v445, %v441
    %v498 = vpack.c.b16 %v446, %v442
    %v499 = vpack.c.b16 %v451, %v447
    %v500 = vpack.c.b16 %v452, %v448
    %v501 = vpack.c.b16 %v453, %v449
    %v502 = vpack.c.b16 %v454, %v450
    %v503 = vpack.c.b16 %v459, %v455
    %v504 = vpack.c.b16 %v460, %v456
    %v505 = vpack.c.b16 %v461, %v457
    %v506 = vpack.c.b16 %v462, %v458
    %v507 = vpack.c.b16 %v467, %v463
    %v508 = vpack.c.b16 %v468, %v464
    %v509 = vpack.c.b16 %v469, %v465
    %v510 = vpack.c.b16 %v470, %v466
    %v511 = vpack.c.b16 %v475, %v471
    %v512 = vpack.c.b16 %v476, %v472
    %v513 = vpack.c.b16 %v477, %v473
    %v514 = vpack.c.b16 %v478, %v474
    %v515 = vpack.c.b16 %v483, %v479
    %v516 = vpack.c.b16 %v484, %v480
    %v517 = vpack.c.b16 %v485, %v481
    %v518 = vpack.c.b16 %v486, %v482
    %551 = vmatpush.bf16.msra.mxu0 %v515
    %552 = vmatpush.bf16.msra.mxu0 %v511
    %553 = vmatpush.bf16.msra.mxu0 %v507
    %554 = vmatpush.bf16.msra.mxu0 %v503
    %555 = vmatpush.bf16.msra.mxu0 %v499
    %556 = vmatpush.bf16.msra.mxu0 %v495
    %557 = vmatpush.bf16.msra.mxu0 %v491
    %558 = vmatpush.bf16.msra.mxu0 %v487
    %559 = vmatmul.bf16.gmra.mxu0 %v19
    %v560 = vpop.f32.mrf.mxu0
    %v561 = vadd.f32 %v349, %v560
    %v562 = vpop.f32.mrf.mxu0
    %563 = vdwg.mxu0
    %564 = vmatpush.bf16.msra.mxu0 %v516
    %565 = vmatpush.bf16.msra.mxu0 %v512
    %566 = vmatpush.bf16.msra.mxu0 %v508
    %567 = vmatpush.bf16.msra.mxu0 %v504
    %568 = vmatpush.bf16.msra.mxu0 %v500
    %569 = vmatpush.bf16.msra.mxu0 %v496
    %570 = vmatpush.bf16.msra.mxu0 %v492
    %571 = vmatpush.bf16.msra.mxu0 %v488
    %572 = vmatmul.bf16.gmra.mxu0 %v19
    %v573 = vpop.f32.mrf.mxu0
    %v574 = vadd.f32 %v362, %v573
    %v575 = vpop.f32.mrf.mxu0
    %576 = vdwg.mxu0
    %577 = vmatpush.bf16.msra.mxu0 %v517
    %578 = vmatpush.bf16.msra.mxu0 %v513
    %579 = vmatpush.bf16.msra.mxu0 %v509
    %580 = vmatpush.bf16.msra.mxu0 %v505
    %581 = vmatpush.bf16.msra.mxu0 %v501
    %582 = vmatpush.bf16.msra.mxu0 %v497
    %583 = vmatpush.bf16.msra.mxu0 %v493
    %584 = vmatpush.bf16.msra.mxu0 %v489
    %585 = vmatmul.bf16.gmra.mxu0 %v19
    %v586 = vpop.f32.mrf.mxu0
    %v587 = vadd.f32 %v375, %v586
    %v588 = vpop.f32.mrf.mxu0
    %589 = vdwg.mxu0
    %590 = vmatpush.bf16.msra.mxu0 %v518
    %591 = vmatpush.bf16.msra.mxu0 %v514
    %592 = vmatpush.bf16.msra.mxu0 %v510
    %593 = vmatpush.bf16.msra.mxu0 %v506
    %594 = vmatpush.bf16.msra.mxu0 %v502
    %595 = vmatpush.bf16.msra.mxu0 %v498
    %596 = vmatpush.bf16.msra.mxu0 %v494
    %597 = vmatpush.bf16.msra.mxu0 %v490
    %598 = vmatmul.bf16.gmra.mxu0 %v19
    %v599 = vpop.f32.mrf.mxu0
    %v600 = vadd.f32 %v388, %v599
    %v601 = vpop.f32.mrf.mxu0
    %602 = vdwg.mxu0
    %604 = vrot.lane.b32.xlu0 %v561, 64
    %v605 = vpop.permute.xlu0 %604
    %608 = vrot.lane.b32.xlu0 %v574, 64
    %v609 = vpop.permute.xlu0 %608
    %612 = vrot.lane.b32.xlu0 %v587, 64
    %v613 = vpop.permute.xlu0 %612
    %v615 = vperm.slane %v21, 3
    %vm616 = vcmask 457728
    %v618 = vsel %vm616, %v20, 0
    %620 = vmatpush.msra.mxu0 0.0
    %621 = vmatpush.msra.mxu0 0.0
    %622 = vmatpush.msra.mxu0 0.0
    %623 = vmatpush.msra.mxu0 0.0
    %624 = vmatpush.msra.mxu0 0.0
    %625 = vmatpush.msra.mxu0 0.0
    %626 = vmatpush.msra.mxu0 0.0
    %627 = vmatpush.msra.mxu0 0.0
    %628 = vmatpush.msra.mxu0 0.0
    %629 = vmatpush.msra.mxu0 %v600
    %630 = vmatpush.msra.mxu0 %v613
    %631 = vmatpush.msra.mxu0 %v587
    %632 = vmatpush.msra.mxu0 %v609
    %633 = vmatpush.msra.mxu0 %v574
    %634 = vmatpush.msra.mxu0 %v605
    %635 = vmatpush.msra.mxu0 %v561
    %636 = vmatmul.f32.gmra.mxu0 %v618
    %v637 = vpop.f32.mrf.mxu0
    %v638 = vadd.f32 %v615, %v637
    %639 = vdwg.mxu0
    %v640 = vmax.f32 %v638, 0.0
    %v641 = vpack.c.bf16 %v640, %v640
    %v642 = vld [vmem:[%s2 + $0x380] sm:$0xff]
    %v643 = vld [vmem:[%s2 + $0x388] sm:$0xff]
    %v644 = vld [vmem:[%s2 + $0x390] sm:$0xff]
    %v645 = vld [vmem:[%s2 + $0x398] sm:$0xff]
    %v646 = vld [vmem:[%s2 + $0x3a0] sm:$0xff]
    %v647 = vld [vmem:[%s2 + $0x3a8] sm:$0xff]
    %v648 = vld [vmem:[%s2 + $0x3b0] sm:$0xff]
    %v649 = vld [vmem:[%s2 + $0x3b8] sm:$0xff]
    %v650 = vld [vmem:[%s2 + $0x3c0] sm:$0xff]
    %v651 = vld [vmem:[%s2 + $0x3c8] sm:$0xff]
    %v652 = vld [vmem:[%s2 + $0x3d0] sm:$0xff]
    %v653 = vld [vmem:[%s2 + $0x3d8] sm:$0xff]
    %v654 = vld [vmem:[%s2 + $0x3e0] sm:$0xff]
    %v655 = vld [vmem:[%s2 + $0x3e8] sm:$0xff]
    %v656 = vld [vmem:[%s2 + $0x3f0] sm:$0xff]
    %v657 = vld [vmem:[%s2 + $0x3f8] sm:$0xff]
    %v674 = vunpack.c.l.b16 %v642
    %v675 = vunpack.c.h.b16 %v642
    %v676 = vunpack.c.l.b16 %v643
    %v677 = vunpack.c.h.b16 %v643
    %v678 = vunpack.c.l.b16 %v644
    %v679 = vunpack.c.h.b16 %v644
    %v680 = vunpack.c.l.b16 %v645
    %v681 = vunpack.c.h.b16 %v645
    %v682 = vunpack.c.l.b16 %v646
    %v683 = vunpack.c.h.b16 %v646
    %v684 = vunpack.c.l.b16 %v647
    %v685 = vunpack.c.h.b16 %v647
    %v686 = vunpack.c.l.b16 %v648
    %v687 = vunpack.c.h.b16 %v648
    %v688 = vunpack.c.l.b16 %v649
    %v689 = vunpack.c.h.b16 %v649
    %v690 = vunpack.c.l.b16 %v650
    %v691 = vunpack.c.h.b16 %v650
    %v692 = vunpack.c.l.b16 %v651
    %v693 = vunpack.c.h.b16 %v651
    %v694 = vunpack.c.l.b16 %v652
    %v695 = vunpack.c.h.b16 %v652
    %v696 = vunpack.c.l.b16 %v653
    %v697 = vunpack.c.h.b16 %v653
    %v698 = vunpack.c.l.b16 %v654
    %v699 = vunpack.c.h.b16 %v654
    %v700 = vunpack.c.l.b16 %v655
    %v701 = vunpack.c.h.b16 %v655
    %v702 = vunpack.c.l.b16 %v656
    %v703 = vunpack.c.h.b16 %v656
    %v704 = vunpack.c.l.b16 %v657
    %v705 = vunpack.c.h.b16 %v657
    %v706 = vpack.c.b16 %v678, %v674
    %v707 = vpack.c.b16 %v679, %v675
    %v708 = vpack.c.b16 %v680, %v676
    %v709 = vpack.c.b16 %v681, %v677
    %v710 = vpack.c.b16 %v686, %v682
    %v711 = vpack.c.b16 %v687, %v683
    %v712 = vpack.c.b16 %v688, %v684
    %v713 = vpack.c.b16 %v689, %v685
    %v714 = vpack.c.b16 %v694, %v690
    %v715 = vpack.c.b16 %v695, %v691
    %v716 = vpack.c.b16 %v696, %v692
    %v717 = vpack.c.b16 %v697, %v693
    %v718 = vpack.c.b16 %v702, %v698
    %v719 = vpack.c.b16 %v703, %v699
    %v720 = vpack.c.b16 %v704, %v700
    %v721 = vpack.c.b16 %v705, %v701
    %v739 = vsel %vm139, %v641, 0
    %741 = vmatpush.bf16.msra.mxu0 0
    %742 = vmatpush.bf16.msra.mxu0 0
    %743 = vmatpush.bf16.msra.mxu0 0
    %744 = vmatpush.bf16.msra.mxu0 0
    %745 = vmatpush.bf16.msra.mxu0 %v718
    %746 = vmatpush.bf16.msra.mxu0 %v714
    %747 = vmatpush.bf16.msra.mxu0 %v710
    %748 = vmatpush.bf16.msra.mxu0 %v706
    %749 = vmatmul.bf16.gmra.mxu0 %v739
    %v750 = vpop.f32.mrf.mxu0
    %v751 = vadd.f32 0.0, %v750
    %v752 = vpop.f32.mrf.mxu0
    %753 = vdwg.mxu0
    %754 = vmatpush.bf16.msra.mxu0 0
    %755 = vmatpush.bf16.msra.mxu0 0
    %756 = vmatpush.bf16.msra.mxu0 0
    %757 = vmatpush.bf16.msra.mxu0 0
    %758 = vmatpush.bf16.msra.mxu0 %v719
    %759 = vmatpush.bf16.msra.mxu0 %v715
    %760 = vmatpush.bf16.msra.mxu0 %v711
    %761 = vmatpush.bf16.msra.mxu0 %v707
    %762 = vmatmul.bf16.gmra.mxu0 %v739
    %v763 = vpop.f32.mrf.mxu0
    %v764 = vadd.f32 0.0, %v763
    %v765 = vpop.f32.mrf.mxu0
    %766 = vdwg.mxu0
    %767 = vmatpush.bf16.msra.mxu0 0
    %768 = vmatpush.bf16.msra.mxu0 0
    %769 = vmatpush.bf16.msra.mxu0 0
    %770 = vmatpush.bf16.msra.mxu0 0
    %771 = vmatpush.bf16.msra.mxu0 %v720
    %772 = vmatpush.bf16.msra.mxu0 %v716
    %773 = vmatpush.bf16.msra.mxu0 %v712
    %774 = vmatpush.bf16.msra.mxu0 %v708
    %775 = vmatmul.bf16.gmra.mxu0 %v739
    %v776 = vpop.f32.mrf.mxu0
    %v777 = vadd.f32 0.0, %v776
    %v778 = vpop.f32.mrf.mxu0
    %779 = vdwg.mxu0
    %780 = vmatpush.bf16.msra.mxu0 0
    %781 = vmatpush.bf16.msra.mxu0 0
    %782 = vmatpush.bf16.msra.mxu0 0
    %783 = vmatpush.bf16.msra.mxu0 0
    %784 = vmatpush.bf16.msra.mxu0 %v721
    %785 = vmatpush.bf16.msra.mxu0 %v717
    %786 = vmatpush.bf16.msra.mxu0 %v713
    %787 = vmatpush.bf16.msra.mxu0 %v709
    %788 = vmatmul.bf16.gmra.mxu0 %v739
    %v789 = vpop.f32.mrf.mxu0
    %v790 = vadd.f32 0.0, %v789
    %v791 = vpop.f32.mrf.mxu0
    %792 = vdwg.mxu0
    %794 = vrot.lane.b32.xlu0 %v751, 64
    %v795 = vpop.permute.xlu0 %794
    %798 = vrot.lane.b32.xlu0 %v764, 64
    %v799 = vpop.permute.xlu0 %798
    %802 = vrot.lane.b32.xlu0 %v777, 64
    %v803 = vpop.permute.xlu0 %802
    %v805 = vperm.slane %v21, 4
    %806 = vmatpush.msra.mxu0 0.0
    %807 = vmatpush.msra.mxu0 0.0
    %808 = vmatpush.msra.mxu0 0.0
    %809 = vmatpush.msra.mxu0 0.0
    %810 = vmatpush.msra.mxu0 0.0
    %811 = vmatpush.msra.mxu0 0.0
    %812 = vmatpush.msra.mxu0 0.0
    %813 = vmatpush.msra.mxu0 0.0
    %814 = vmatpush.msra.mxu0 0.0
    %815 = vmatpush.msra.mxu0 %v790
    %816 = vmatpush.msra.mxu0 %v803
    %817 = vmatpush.msra.mxu0 %v777
    %818 = vmatpush.msra.mxu0 %v799
    %819 = vmatpush.msra.mxu0 %v764
    %820 = vmatpush.msra.mxu0 %v795
    %821 = vmatpush.msra.mxu0 %v751
    %822 = vmatmul.f32.gmra.mxu0 %v618
    %v823 = vpop.f32.mrf.mxu0
    %v824 = vadd.f32 %v805, %v823
    %825 = vdwg.mxu0
    %v826 = vmax.f32 %v824, 0.0
    %v827 = vpack.c.bf16 %v826, %v826
    %v828 = vld [vmem:[%s2 + $0x400] sm:$0xff]
    %v829 = vld [vmem:[%s2 + $0x408] sm:$0xff]
    %v830 = vld [vmem:[%s2 + $0x410] sm:$0xff]
    %v831 = vld [vmem:[%s2 + $0x418] sm:$0xff]
    %v832 = vld [vmem:[%s2 + $0x420] sm:$0xff]
    %v833 = vld [vmem:[%s2 + $0x428] sm:$0xff]
    %v834 = vld [vmem:[%s2 + $0x430] sm:$0xff]
    %v835 = vld [vmem:[%s2 + $0x438] sm:$0xff]
    %v836 = vld [vmem:[%s2 + $0x440] sm:$0xff]
    %v837 = vld [vmem:[%s2 + $0x448] sm:$0xff]
    %v838 = vld [vmem:[%s2 + $0x450] sm:$0xff]
    %v839 = vld [vmem:[%s2 + $0x458] sm:$0xff]
    %v840 = vld [vmem:[%s2 + $0x460] sm:$0xff]
    %v841 = vld [vmem:[%s2 + $0x468] sm:$0xff]
    %v842 = vld [vmem:[%s2 + $0x470] sm:$0xff]
    %v843 = vld [vmem:[%s2 + $0x478] sm:$0xff]
    %v860 = vunpack.c.l.b16 %v828
    %v861 = vunpack.c.h.b16 %v828
    %v862 = vunpack.c.l.b16 %v829
    %v863 = vunpack.c.h.b16 %v829
    %v864 = vunpack.c.l.b16 %v830
    %v865 = vunpack.c.h.b16 %v830
    %v866 = vunpack.c.l.b16 %v831
    %v867 = vunpack.c.h.b16 %v831
    %v868 = vunpack.c.l.b16 %v832
    %v869 = vunpack.c.h.b16 %v832
    %v870 = vunpack.c.l.b16 %v833
    %v871 = vunpack.c.h.b16 %v833
    %v872 = vunpack.c.l.b16 %v834
    %v873 = vunpack.c.h.b16 %v834
    %v874 = vunpack.c.l.b16 %v835
    %v875 = vunpack.c.h.b16 %v835
    %v876 = vunpack.c.l.b16 %v836
    %v877 = vunpack.c.h.b16 %v836
    %v878 = vunpack.c.l.b16 %v837
    %v879 = vunpack.c.h.b16 %v837
    %v880 = vunpack.c.l.b16 %v838
    %v881 = vunpack.c.h.b16 %v838
    %v882 = vunpack.c.l.b16 %v839
    %v883 = vunpack.c.h.b16 %v839
    %v884 = vunpack.c.l.b16 %v840
    %v885 = vunpack.c.h.b16 %v840
    %v886 = vunpack.c.l.b16 %v841
    %v887 = vunpack.c.h.b16 %v841
    %v888 = vunpack.c.l.b16 %v842
    %v889 = vunpack.c.h.b16 %v842
    %v890 = vunpack.c.l.b16 %v843
    %v891 = vunpack.c.h.b16 %v843
    %v892 = vpack.c.b16 %v864, %v860
    %v893 = vpack.c.b16 %v865, %v861
    %v894 = vpack.c.b16 %v866, %v862
    %v895 = vpack.c.b16 %v867, %v863
    %v896 = vpack.c.b16 %v872, %v868
    %v897 = vpack.c.b16 %v873, %v869
    %v898 = vpack.c.b16 %v874, %v870
    %v899 = vpack.c.b16 %v875, %v871
    %v900 = vpack.c.b16 %v880, %v876
    %v901 = vpack.c.b16 %v881, %v877
    %v902 = vpack.c.b16 %v882, %v878
    %v903 = vpack.c.b16 %v883, %v879
    %v904 = vpack.c.b16 %v888, %v884
    %v905 = vpack.c.b16 %v889, %v885
    %v906 = vpack.c.b16 %v890, %v886
    %v907 = vpack.c.b16 %v891, %v887
    %v925 = vsel %vm139, %v827, 0
    %927 = vmatpush.bf16.msra.mxu0 0
    %928 = vmatpush.bf16.msra.mxu0 0
    %929 = vmatpush.bf16.msra.mxu0 0
    %930 = vmatpush.bf16.msra.mxu0 0
    %931 = vmatpush.bf16.msra.mxu0 %v904
    %932 = vmatpush.bf16.msra.mxu0 %v900
    %933 = vmatpush.bf16.msra.mxu0 %v896
    %934 = vmatpush.bf16.msra.mxu0 %v892
    %935 = vmatmul.bf16.gmra.mxu0 %v925
    %v936 = vpop.f32.mrf.mxu0
    %v937 = vadd.f32 0.0, %v936
    %v938 = vpop.f32.mrf.mxu0
    %939 = vdwg.mxu0
    %940 = vmatpush.bf16.msra.mxu0 0
    %941 = vmatpush.bf16.msra.mxu0 0
    %942 = vmatpush.bf16.msra.mxu0 0
    %943 = vmatpush.bf16.msra.mxu0 0
    %944 = vmatpush.bf16.msra.mxu0 %v905
    %945 = vmatpush.bf16.msra.mxu0 %v901
    %946 = vmatpush.bf16.msra.mxu0 %v897
    %947 = vmatpush.bf16.msra.mxu0 %v893
    %948 = vmatmul.bf16.gmra.mxu0 %v925
    %v949 = vpop.f32.mrf.mxu0
    %v950 = vadd.f32 0.0, %v949
    %v951 = vpop.f32.mrf.mxu0
    %952 = vdwg.mxu0
    %953 = vmatpush.bf16.msra.mxu0 0
    %954 = vmatpush.bf16.msra.mxu0 0
    %955 = vmatpush.bf16.msra.mxu0 0
    %956 = vmatpush.bf16.msra.mxu0 0
    %957 = vmatpush.bf16.msra.mxu0 %v906
    %958 = vmatpush.bf16.msra.mxu0 %v902
    %959 = vmatpush.bf16.msra.mxu0 %v898
    %960 = vmatpush.bf16.msra.mxu0 %v894
    %961 = vmatmul.bf16.gmra.mxu0 %v925
    %v962 = vpop.f32.mrf.mxu0
    %v963 = vadd.f32 0.0, %v962
    %v964 = vpop.f32.mrf.mxu0
    %965 = vdwg.mxu0
    %966 = vmatpush.bf16.msra.mxu0 0
    %967 = vmatpush.bf16.msra.mxu0 0
    %968 = vmatpush.bf16.msra.mxu0 0
    %969 = vmatpush.bf16.msra.mxu0 0
    %970 = vmatpush.bf16.msra.mxu0 %v907
    %971 = vmatpush.bf16.msra.mxu0 %v903
    %972 = vmatpush.bf16.msra.mxu0 %v899
    %973 = vmatpush.bf16.msra.mxu0 %v895
    %974 = vmatmul.bf16.gmra.mxu0 %v925
    %v975 = vpop.f32.mrf.mxu0
    %v976 = vadd.f32 0.0, %v975
    %v977 = vpop.f32.mrf.mxu0
    %978 = vdwg.mxu0
    %980 = vrot.lane.b32.xlu0 %v937, 64
    %v981 = vpop.permute.xlu0 %980
    %984 = vrot.lane.b32.xlu0 %v950, 64
    %v985 = vpop.permute.xlu0 %984
    %988 = vrot.lane.b32.xlu0 %v963, 64
    %v989 = vpop.permute.xlu0 %988
    %v991 = vperm.slane %v21, 5
    %992 = vmatpush.msra.mxu0 0.0
    %993 = vmatpush.msra.mxu0 0.0
    %994 = vmatpush.msra.mxu0 0.0
    %995 = vmatpush.msra.mxu0 0.0
    %996 = vmatpush.msra.mxu0 0.0
    %997 = vmatpush.msra.mxu0 0.0
    %998 = vmatpush.msra.mxu0 0.0
    %999 = vmatpush.msra.mxu0 0.0
    %1000 = vmatpush.msra.mxu0 0.0
    %1001 = vmatpush.msra.mxu0 %v976
    %1002 = vmatpush.msra.mxu0 %v989
    %1003 = vmatpush.msra.mxu0 %v963
    %1004 = vmatpush.msra.mxu0 %v985
    %1005 = vmatpush.msra.mxu0 %v950
    %1006 = vmatpush.msra.mxu0 %v981
    %1007 = vmatpush.msra.mxu0 %v937
    %1008 = vmatmul.f32.gmra.mxu0 %v618
    %v1009 = vpop.f32.mrf.mxu0
    %v1010 = vadd.f32 %v991, %v1009
    %1011 = vdwg.mxu0
    %1012 = vst.msk [vmem:[#allocation2] sm:$0xff] %vm139, %v1010
    // Predicated region
    $region18: #{rgcn_forward.1} parent=1 // pred_check
      _
    $region19: #{rgcn_forward.1} parent=1 // pred_check_branch
      %1014 = sbr.rel (0) target = $region21
    $region20: #{rgcn_forward.1} parent=1 // pred_region
      %1016 = vsyncadd [#allocation3], 0
      %s1018 = sshll.u32 [#allocation2], 4
      %s1019 = int_to_ptr.vmem [resolvable:$true] %s1018
      %s1020 = sshll.u32 %s4, 4
      %s1021 = int_to_ptr.hbm [resolvable:$true] %s1020
      %1023 = dma.vmem_to_hbm [thread:$0]  %s1019, 128, %s1021, [#allocation3]
    $region21: #{rgcn_forward.1} parent=1 // pred_fallthru
      _
    // Predicated region
    $region22: #{rgcn_forward.1} parent=1 // pred_check
      _
    $region23: #{rgcn_forward.1} parent=1 // pred_check_branch
      %1025 = sbr.rel (0) target = $region25
    $region24: #{rgcn_forward.1} parent=1 // pred_region
      %1027 = dma.done [#allocation3], 128
    $region25: #{rgcn_forward.1} parent=1 // pred_fallthru
      _
    %1028 = vsyncpa [#allocation3], 1

</llo_original>
